<compile_context>
chip_gen: v5e
topology: v5e:2x2
jax: 0.10.0
libtpu: 0.0.40
codegen_flags: <defaults>
</compile_context>

<pallas_src>
import functools

import jax
import jax.numpy as jnp
from jax import lax
from jax.experimental import pallas as pl
from jax.experimental.pallas import tpu as pltpu

EMB_DIM = 32          # emb_dim
WORD_DIM = 16         # word_dim
NUM_WORDS = 6         # num_words (n_class)
NUM_REGIONS = 8       # regions per image
BATCH = 4
N_AUX = 2
COS_TEMP = 0.05       # cfg.MODEL.cosine_cls_temp
LS_ALPHA = 0.1        # cfg.MODEL.label_smoothing_alpha
INV_COS_TEMP = 1.0 / COS_TEMP


# ---------------------------------------------------------------------------
# Single fused kernel: both forward_attn passes + batched cosine classifier
# + all 10 cross-entropy / accuracy reductions.
# ---------------------------------------------------------------------------
def fused_kernel(img_ref, w_ref, m_ref, out_ref, *, B, R, D, NC):
    BR = B * R
    inv_r = 1.0 / R

    # -------- packed inputs --------
    x1 = img_ref[0:BR, :]                       # (B*R, D)   img1 regions
    x2 = img_ref[BR:3 * BR, :]                  # (2*B*R, D) [img2_a ; img2_o]
    x1t = jnp.concatenate([x1, x1], axis=0)     # img1 tiled over the two passes

    # Weight slab layout (width 2D), row ranges:
    #   [0,D) w1a | [D,2D) w1b | [2D,4D) w2 block-diag | [4D,5D) aowa (cols 0:D)
    #   [5D,6D) aowb (cols 0:D) | [6D,7D) wnT (cols 0:NC)
    #   row 7D: b1 | row 7D+1: b2 | row 7D+2: aob (cols 0:D)
    w1a = w_ref[0:D, :]
    w1b = w_ref[D:2 * D, :]
    w2 = w_ref[2 * D:4 * D, :]
    aowa = w_ref[4 * D:5 * D, :][:, 0:D]
    aowb = w_ref[5 * D:6 * D, :][:, 0:D]
    wnT = w_ref[6 * D:7 * D, :][:, 0:NC]
    b1 = w_ref[7 * D:7 * D + 1, :]
    b2 = w_ref[7 * D + 1:7 * D + 2, :]
    aob = w_ref[7 * D + 2:7 * D + 3, :][:, 0:D]

    # -------- both forward_attn passes, stacked along rows --------
    # shared_weights_{1,2}:  cat([img1, img2], -1) @ W1  ==  x1 @ w1a + x2 @ w1b
    t1 = jnp.dot(x1, w1a, preferred_element_type=jnp.float32)          # shared term
    h = (jnp.concatenate([t1, t1], axis=0)
         + jnp.dot(x2, w1b, preferred_element_type=jnp.float32) + b1)
    h = jnp.maximum(h, 0.0)
    sig = jax.nn.sigmoid(jnp.dot(h, w2, preferred_element_type=jnp.float32) + b2)
    sw1 = sig[:, 0:D]            # shared_weight_1 (both passes)
    sw2 = sig[:, D:2 * D]        # shared_weight_2 (both passes)

    def rmean(a):                # (2*B*R, D) -> (2*B, D): mean over regions
        return jnp.sum(a.reshape(2 * B, R, D), axis=1) * inv_r

    s1 = rmean(sw1 * x1t)                                    # shared_image_1
    s2 = rmean(sw2 * x2)                                     # shared_image_2
    d1 = rmean(x1t) - s1                                     # diff_image_1
    d2 = rmean(x2) - s2                                      # diff_image_2
    sh = (jnp.dot(s1, aowa, preferred_element_type=jnp.float32)
          + jnp.dot(s2, aowb, preferred_element_type=jnp.float32) + aob)  # shared_image

    # -------- batched CosineClassifier over all 10 loss blocks --------
    # feats row order: [sh ; s1 ; s2 ; d1 ; d2], each block = [pass_a ; pass_o]
    feats = jnp.concatenate([sh, s1, s2, d1, d2], axis=0)               # (10B, D)
    inv_norm = lax.rsqrt(jnp.maximum(
        jnp.sum(feats * feats, axis=-1, keepdims=True), 1e-24))
    pred = (jnp.dot(feats, wnT, preferred_element_type=jnp.float32)
            * inv_norm) * INV_COS_TEMP                                  # (10B, NC)

    misc = m_ref[...]
    tgt = misc[:, 0:NC]               # soft targets (one-hot / label-smoothed)
    label = misc[:, NC:NC + 1]        # f32-exact class label (for accuracy)
    w_loss = misc[:, NC + 1:NC + 2]   # mask * (1/count) * (1/10)
    w_acc = misc[:, NC + 2:NC + 3]    # mask * (1/count) * (1/6) * in_first_6_blocks

    pmax = jnp.max(pred, axis=-1, keepdims=True)
    lse = pmax + jnp.log(jnp.sum(jnp.exp(pred - pmax), axis=-1, keepdims=True))
    per_row = lse - jnp.sum(pred * tgt, axis=-1, keepdims=True)
    dis_loss = jnp.sum(per_row * w_loss, keepdims=True)                 # (1, 1)

    idx = lax.broadcasted_iota(jnp.int32, pred.shape, 1).astype(jnp.float32)
    cand = jnp.where(pred == pmax, idx, float(NC))
    pred_idx = jnp.min(cand, axis=-1, keepdims=True)     # first-occurrence argmax
    correct = (pred_idx == label).astype(jnp.float32)
    acc = jnp.sum(correct * w_acc, keepdims=True)                       # (1, 1)

    # -------- single packed output (all writes 8-row aligned) --------
    out_ref[0:2 * B, :] = sh
    out_ref[2 * B:4 * B, :] = d1
    out_ref[4 * B:6 * B, :] = d2
    row_i = lax.broadcasted_iota(jnp.int32, (8, D), 0)
    tail = jnp.where(row_i == 0, dis_loss, jnp.where(row_i == 1, acc, 0.0))
    out_ref[6 * B:6 * B + 8, :] = tail


# ---------------------------------------------------------------------------
# jitted core wrapper: packs the three input buffers, calls the kernel once.
# ---------------------------------------------------------------------------
def _pad_cols(x, width):
    return jnp.pad(x, ((0, 0), (0, width - x.shape[1])))


@jax.jit
def _forward_core(p, img1, img2_a, img2_o, attr1, obj1, attr_2_o, obj_2_a,
                  attr_m, obj_m, aux_labels, aux2_a_labels, aux2_o_labels):
    B, R, D = img1.shape
    NC = p["word_table"].shape[0]
    NA = aux_labels.shape[1]
    W = 2 * D

    # ---- packed image buffer (one DMA) ----
    imgs = jnp.concatenate([img1, img2_a, img2_o], axis=0).reshape(3 * B * R, D)

    # ---- packed weight slab (one DMA) ----
    # fuse the two MLP_For_Remain nets: layer-1 output concat, layer-2 block-diag
    w1f = jnp.concatenate([p["sw1_w1"], p["sw2_w1"]], axis=1)            # (2D, 2D)
    b1f = jnp.concatenate([p["sw1_b1"], p["sw2_b1"]], axis=1)
    zero = jnp.zeros((D, D), jnp.float32)
    w2bd = jnp.concatenate(
        [jnp.concatenate([p["sw1_w2"], zero], axis=1),
         jnp.concatenate([zero, p["sw2_w2"]], axis=1)], axis=0)          # (2D, 2D)
    b2f = jnp.concatenate([p["sw1_b2"], p["sw2_b2"]], axis=1)

    # word_embedder lookup + word_mlp + L2 normalization run here under XLA
    # (param-only, tiny); kernel consumes the pre-normalized (D, NC) matrix.
    wh = jnp.maximum(jnp.dot(p["word_table"], p["wm_w1"]) + p["wm_b1"], 0.0)
    wemb = jnp.dot(wh, p["wm_w2"]) + p["wm_b2"]                          # (NC, D)
    wnorm = wemb / jnp.maximum(
        jnp.sqrt(jnp.sum(wemb * wemb, axis=-1, keepdims=True)), 1e-12)
    wnT = wnorm.T                                                        # (D, NC)

    slab = jnp.concatenate([
        w1f[:D],                            # w1a   rows [0, D)
        w1f[D:],                            # w1b   rows [D, 2D)
        w2bd,                               # w2    rows [2D, 4D)
        _pad_cols(p["ao_w"][:D], W),        # aowa  rows [4D, 5D)
        _pad_cols(p["ao_w"][D:], W),        # aowb  rows [5D, 6D)
        _pad_cols(wnT, W),                  # wnT   rows [6D, 7D)
        b1f, b2f,                           # rows 7D, 7D+1
        _pad_cols(p["ao_b"], W),            # aob   row 7D+2
    ], axis=0)                              # (7D+3, 2D)

    # ---- packed per-row misc buffer (one DMA) ----
    # Guard against an empty mask (the PyTorch reference would produce NaN there).
    inv_attr = 1.0 / jnp.maximum(jnp.sum(attr_m), 1.0)
    inv_obj = 1.0 / jnp.maximum(jnp.sum(obj_m), 1.0)

    def t_normal(lbl):
        return jax.nn.one_hot(lbl, NC, dtype=jnp.float32)

    def t_ls(lbl, aux):
        aux_oh = jnp.sum(jax.nn.one_hot(aux, NC, dtype=jnp.float32), axis=1)
        return (1.0 - LS_ALPHA) * t_normal(lbl) + (LS_ALPHA / NA) * aux_oh

    # Block order matches feats = [sh; s1; s2; d1; d2], each block [pass_a; pass_o].
    #          soft target                 label     mask     1/count    in-acc(first 6)
    blocks = [
        (t_normal(attr1),               attr1,    attr_m, inv_attr, 1.0),  # loss1  sh_a
        (t_normal(obj1),                obj1,     obj_m,  inv_obj,  1.0),  # loss6  sh_o
        (t_ls(attr1, aux_labels),       attr1,    attr_m, inv_attr, 1.0),  # loss2  s1_a
        (t_normal(obj1),                obj1,     obj_m,  inv_obj,  0.0),  # loss7  s1_o
        (t_ls(attr1, aux2_a_labels),    attr1,    attr_m, inv_attr, 1.0),  # loss3  s2_a
        (t_normal(obj1),                obj1,     obj_m,  inv_obj,  0.0),  # loss8  s2_o
        (t_normal(obj1),                obj1,     attr_m, inv_attr, 1.0),  # loss4  d1_a
        (t_ls(attr1, aux_labels),       attr1,    obj_m,  inv_obj,  0.0),  # loss9  d1_o
        (t_normal(obj_2_a),             obj_2_a,  attr_m, inv_attr, 1.0),  # loss5  d2_a
        (t_ls(attr_2_o, aux2_o_labels), attr_2_o, obj_m,  inv_obj,  0.0),  # loss10 d2_o
    ]
    t_stk = jnp.concatenate([b[0] for b in blocks], axis=0)               # (10B, NC)
    lbl_stk = jnp.concatenate([b[1] for b in blocks]).astype(jnp.float32)[:, None]
    w_loss = jnp.concatenate([b[2] * b[3] * 0.1 for b in blocks])[:, None]
    w_acc = jnp.concatenate([b[2] * b[3] * (b[4] / 6.0) for b in blocks])[:, None]
    misc = jnp.concatenate([t_stk, lbl_stk, w_loss, w_acc], axis=1)       # (10B, NC+3)

    kernel = functools.partial(fused_kernel, B=B, R=R, D=D, NC=NC)
    out = pl.pallas_call(
        kernel,
        out_shape=jax.ShapeDtypeStruct((6 * B + 8, D), jnp.float32),
        in_specs=[pl.BlockSpec(memory_space=pltpu.MemorySpace.VMEM)] * 3,
        out_specs=pl.BlockSpec(memory_space=pltpu.MemorySpace.VMEM),
    )(imgs, slab, misc)

    sh = out[0:2 * B]
    d1 = out[2 * B:4 * B]
    d2 = out[4 * B:6 * B]
    dis_loss = out[6 * B, 0]
    acc = out[6 * B + 1, 0]
    return sh, d1, d2, dis_loss, acc


# ---------------------------------------------------------------------------
# Parameters (deterministic init, PyTorch-Linear-style uniform bounds).
# Weights stored (in_dim, out_dim) so matmuls are x @ W.
# ---------------------------------------------------------------------------
def init_params(key):
    ks = jax.random.split(key, 8)

    def lin(k, fin, fout):
        kw, kb = jax.random.split(k)
        bound = 1.0 / jnp.sqrt(float(fin))
        w = jax.random.uniform(kw, (fin, fout), jnp.float32, -bound, bound)
        b = jax.random.uniform(kb, (1, fout), jnp.float32, -bound, bound)
        return w, b

    p = {}
    p["sw1_w1"], p["sw1_b1"] = lin(ks[0], 2 * EMB_DIM, EMB_DIM)
    p["sw1_w2"], p["sw1_b2"] = lin(ks[1], EMB_DIM, EMB_DIM)
    p["sw2_w1"], p["sw2_b1"] = lin(ks[2], 2 * EMB_DIM, EMB_DIM)
    p["sw2_w2"], p["sw2_b2"] = lin(ks[3], EMB_DIM, EMB_DIM)
    p["ao_w"], p["ao_b"] = lin(ks[4], 2 * EMB_DIM, EMB_DIM)          # ao_2_word
    p["wm_w1"], p["wm_b1"] = lin(ks[5], WORD_DIM, WORD_DIM // 2)     # word_mlp layer 1
    p["wm_w2"], p["wm_b2"] = lin(ks[6], WORD_DIM // 2, EMB_DIM)      # word_mlp layer 2
    p["word_table"] = jax.random.normal(ks[7], (NUM_WORDS, WORD_DIM), jnp.float32)
    return p


# ---------------------------------------------------------------------------
# Full AO_DIS_MODULE.forward
# ---------------------------------------------------------------------------
def ao_dis_forward(p, img1, img2_a, img2_o, attr1, obj1, attr_2_o, obj_2_a,
                   attr_mask_task, obj_mask_task, aux_labels, aux2_a_labels,
                   aux2_o_labels):
    attr_mask = attr_mask_task == 1
    obj_mask = obj_mask_task == 1
    B = img1.shape[0]

    sh, d1, d2, dis_loss, acc = _forward_core(
        p, img1, img2_a, img2_o, attr1, obj1, attr_2_o, obj_2_a,
        attr_mask.astype(jnp.float32), obj_mask.astype(jnp.float32),
        aux_labels, aux2_a_labels, aux2_o_labels)

    # rows [0:B] = (img1, img2_a) pass, rows [B:2B] = (img1, img2_o) pass
    shared_image, shared_image_ = sh[:B], sh[B:]
    diff_image_1, diff_image_1_ = d1[:B], d1[B:]
    diff_image_2_a, diff_image_2_o_ = d2[:B], d2[B:]

    # Data-dependent boolean row selection stays eager (shapes are data-dependent).
    out = {
        "attr_mask": attr_mask,
        "obj_mask": obj_mask,
        "shared_image": shared_image[attr_mask],
        "diff_image_1": diff_image_1[attr_mask],
        "diff_image_2_a": diff_image_2_a[attr_mask],
        "shared_image_": shared_image_[obj_mask],
        "diff_image_1_": diff_image_1_[obj_mask],
        "diff_image_2_o_": diff_image_2_o_[obj_mask],
        "dis_loss": dis_loss,
        "acc": acc,
    }
    return out


if __name__ == "__main__":
    key = jax.random.PRNGKey(0)
    kp, k1, k2, k3, kl = jax.random.split(key, 5)
    params = init_params(kp)

    img1 = jax.random.normal(k1, (BATCH, NUM_REGIONS, EMB_DIM), jnp.float32)
    img2_a = jax.random.normal(k2, (BATCH, NUM_REGIONS, EMB_DIM), jnp.float32)
    img2_o = jax.random.normal(k3, (BATCH, NUM_REGIONS, EMB_DIM), jnp.float32)

    kls = jax.random.split(kl, 7)
    attr1 = jax.random.randint(kls[0], (BATCH,), 0, NUM_WORDS)
    obj1 = jax.random.randint(kls[1], (BATCH,), 0, NUM_WORDS)
    attr_2_o = jax.random.randint(kls[2], (BATCH,), 0, NUM_WORDS)
    obj_2_a = jax.random.randint(kls[3], (BATCH,), 0, NUM_WORDS)
    attr_mask_task = jnp.array([1, 0, 1, 0], jnp.int32)
    obj_mask_task = jnp.array([0, 1, 0, 1], jnp.int32)
    aux_labels = jax.random.randint(kls[4], (BATCH, N_AUX), 0, NUM_WORDS)
    aux2_a_labels = jax.random.randint(kls[5], (BATCH, N_AUX), 0, NUM_WORDS)
    aux2_o_labels = jax.random.randint(kls[6], (BATCH, N_AUX), 0, NUM_WORDS)

    out = ao_dis_forward(params, img1, img2_a, img2_o, attr1, obj1, attr_2_o,
                         obj_2_a, attr_mask_task, obj_mask_task,
                         aux_labels, aux2_a_labels, aux2_o_labels)
    jax.block_until_ready(out["dis_loss"])
    jax.block_until_ready(out["acc"])
    jax.block_until_ready(out["shared_image"])
    jax.block_until_ready(out["diff_image_2_o_"])
    print("KERNEL_OK")
</pallas_src>

<mosaic_0001>
module attributes {stable_mosaic.version = 11 : i64} {
  func.func @fused_kernel(%arg0: memref<96x32xf32, #tpu.memory_space<vmem>>, %arg1: memref<227x64xf32, #tpu.memory_space<vmem>>, %arg2: memref<40x9xf32, #tpu.memory_space<vmem>>, %arg3: memref<32x32xf32, #tpu.memory_space<vmem>>) attributes {dimension_semantics = [], scalar_prefetch = 0 : i64, scratch_operands = 0 : i64, tpu.core_type = #tpu.core_type<tc>} {
    %c0 = arith.constant 0 : index
    %c0_0 = arith.constant 0 : index
    %0 = vector.load %arg0[%c0, %c0_0] : memref<96x32xf32, #tpu.memory_space<vmem>>, vector<32x32xf32>
    %c32 = arith.constant 32 : index
    %c0_1 = arith.constant 0 : index
    %1 = vector.load %arg0[%c32, %c0_1] : memref<96x32xf32, #tpu.memory_space<vmem>>, vector<64x32xf32>
    %2 = tpu.concatenate %0, %0 in 0 : vector<32x32xf32>, vector<32x32xf32> -> vector<64x32xf32>
    %c0_2 = arith.constant 0 : index
    %c0_3 = arith.constant 0 : index
    %3 = vector.load %arg1[%c0_2, %c0_3] : memref<227x64xf32, #tpu.memory_space<vmem>>, vector<32x64xf32>
    %c32_4 = arith.constant 32 : index
    %c0_5 = arith.constant 0 : index
    %4 = vector.load %arg1[%c32_4, %c0_5] : memref<227x64xf32, #tpu.memory_space<vmem>>, vector<32x64xf32>
    %c64 = arith.constant 64 : index
    %c0_6 = arith.constant 0 : index
    %5 = vector.load %arg1[%c64, %c0_6] : memref<227x64xf32, #tpu.memory_space<vmem>>, vector<64x64xf32>
    %c128 = arith.constant 128 : index
    %c0_7 = arith.constant 0 : index
    %6 = vector.load %arg1[%c128, %c0_7] : memref<227x64xf32, #tpu.memory_space<vmem>>, vector<32x64xf32>
    %7 = vector.extract_strided_slice %6 {offsets = [0, 0], sizes = [32, 32], strides = [1, 1]} : vector<32x64xf32> to vector<32x32xf32>
    %c160 = arith.constant 160 : index
    %c0_8 = arith.constant 0 : index
    %8 = vector.load %arg1[%c160, %c0_8] : memref<227x64xf32, #tpu.memory_space<vmem>>, vector<32x64xf32>
    %9 = vector.extract_strided_slice %8 {offsets = [0, 0], sizes = [32, 32], strides = [1, 1]} : vector<32x64xf32> to vector<32x32xf32>
    %c192 = arith.constant 192 : index
    %c0_9 = arith.constant 0 : index
    %10 = vector.load %arg1[%c192, %c0_9] : memref<227x64xf32, #tpu.memory_space<vmem>>, vector<32x64xf32>
    %11 = vector.extract_strided_slice %10 {offsets = [0, 0], sizes = [32, 6], strides = [1, 1]} : vector<32x64xf32> to vector<32x6xf32>
    %c224 = arith.constant 224 : index
    %c0_10 = arith.constant 0 : index
    %12 = vector.load %arg1[%c224, %c0_10] : memref<227x64xf32, #tpu.memory_space<vmem>>, vector<1x64xf32>
    %c225 = arith.constant 225 : index
    %c0_11 = arith.constant 0 : index
    %13 = vector.load %arg1[%c225, %c0_11] : memref<227x64xf32, #tpu.memory_space<vmem>>, vector<1x64xf32>
    %c226 = arith.constant 226 : index
    %c0_12 = arith.constant 0 : index
    %14 = vector.load %arg1[%c226, %c0_12] : memref<227x64xf32, #tpu.memory_space<vmem>>, vector<1x64xf32>
    %15 = vector.extract_strided_slice %14 {offsets = [0, 0], sizes = [1, 32], strides = [1, 1]} : vector<1x64xf32> to vector<1x32xf32>
    %cst = arith.constant dense<0.000000e+00> : vector<32x64xf32>
    %16 = tpu.matmul %0, %3, %cst {dimension_numbers = #tpu.dot_dimension_numbers<[1], [0], [0], [1], [0, 0, 1, 1], [], []>} : vector<32x32xf32>, vector<32x64xf32>, vector<32x64xf32> -> vector<32x64xf32>
    %17 = tpu.concatenate %16, %16 in 0 : vector<32x64xf32>, vector<32x64xf32> -> vector<64x64xf32>
    %cst_13 = arith.constant dense<0.000000e+00> : vector<64x64xf32>
    %18 = tpu.matmul %1, %4, %cst_13 {dimension_numbers = #tpu.dot_dimension_numbers<[1], [0], [0], [1], [0, 0, 1, 1], [], []>} : vector<64x32xf32>, vector<32x64xf32>, vector<64x64xf32> -> vector<64x64xf32>
    %19 = arith.addf %17, %18 : vector<64x64xf32>
    %20 = vector.broadcast %12 : vector<1x64xf32> to vector<64x64xf32>
    %21 = arith.addf %19, %20 : vector<64x64xf32>
    %cst_14 = arith.constant 0.000000e+00 : f32
    %22 = vector.broadcast %cst_14 : f32 to vector<64x64xf32>
    %23 = arith.maximumf %21, %22 : vector<64x64xf32>
    %cst_15 = arith.constant dense<0.000000e+00> : vector<64x64xf32>
    %24 = tpu.matmul %23, %5, %cst_15 {dimension_numbers = #tpu.dot_dimension_numbers<[1], [0], [0], [1], [0, 0, 1, 1], [], []>} : vector<64x64xf32>, vector<64x64xf32>, vector<64x64xf32> -> vector<64x64xf32>
    %25 = vector.broadcast %13 : vector<1x64xf32> to vector<64x64xf32>
    %26 = arith.addf %24, %25 : vector<64x64xf32>
    %27 = arith.negf %26 : vector<64x64xf32>
    %28 = math.exp %27 : vector<64x64xf32>
    %cst_16 = arith.constant 1.000000e+00 : f32
    %29 = vector.broadcast %cst_16 : f32 to vector<64x64xf32>
    %30 = arith.addf %29, %28 : vector<64x64xf32>
    %31 = arith.divf %29, %30 : vector<64x64xf32>
    %32 = vector.extract_strided_slice %31 {offsets = [0, 0], sizes = [64, 32], strides = [1, 1]} : vector<64x64xf32> to vector<64x32xf32>
    %33 = vector.extract_strided_slice %31 {offsets = [0, 32], sizes = [64, 32], strides = [1, 1]} : vector<64x64xf32> to vector<64x32xf32>
    %34 = arith.mulf %32, %2 : vector<64x32xf32>
    %35 = vector.shape_cast %34 : vector<64x32xf32> to vector<8x8x32xf32>
    %cst_17 = arith.constant dense<0.000000e+00> : vector<8x32xf32>
    %36 = vector.multi_reduction <add>, %35, %cst_17 [1] : vector<8x8x32xf32> to vector<8x32xf32>
    %cst_18 = arith.constant 1.250000e-01 : f32
    %37 = vector.broadcast %cst_18 : f32 to vector<8x32xf32>
    %38 = arith.mulf %36, %37 : vector<8x32xf32>
    %39 = arith.mulf %33, %1 : vector<64x32xf32>
    %40 = vector.shape_cast %39 : vector<64x32xf32> to vector<8x8x32xf32>
    %cst_19 = arith.constant dense<0.000000e+00> : vector<8x32xf32>
    %41 = vector.multi_reduction <add>, %40, %cst_19 [1] : vector<8x8x32xf32> to vector<8x32xf32>
    %cst_20 = arith.constant 1.250000e-01 : f32
    %42 = vector.broadcast %cst_20 : f32 to vector<8x32xf32>
    %43 = arith.mulf %41, %42 : vector<8x32xf32>
    %44 = vector.shape_cast %2 : vector<64x32xf32> to vector<8x8x32xf32>
    %cst_21 = arith.constant dense<0.000000e+00> : vector<8x32xf32>
    %45 = vector.multi_reduction <add>, %44, %cst_21 [1] : vector<8x8x32xf32> to vector<8x32xf32>
    %cst_22 = arith.constant 1.250000e-01 : f32
    %46 = vector.broadcast %cst_22 : f32 to vector<8x32xf32>
    %47 = arith.mulf %45, %46 : vector<8x32xf32>
    %48 = arith.subf %47, %38 : vector<8x32xf32>
    %49 = vector.shape_cast %1 : vector<64x32xf32> to vector<8x8x32xf32>
    %cst_23 = arith.constant dense<0.000000e+00> : vector<8x32xf32>
    %50 = vector.multi_reduction <add>, %49, %cst_23 [1] : vector<8x8x32xf32> to vector<8x32xf32>
    %cst_24 = arith.constant 1.250000e-01 : f32
    %51 = vector.broadcast %cst_24 : f32 to vector<8x32xf32>
    %52 = arith.mulf %50, %51 : vector<8x32xf32>
    %53 = arith.subf %52, %43 : vector<8x32xf32>
    %cst_25 = arith.constant dense<0.000000e+00> : vector<8x32xf32>
    %54 = tpu.matmul %38, %7, %cst_25 {dimension_numbers = #tpu.dot_dimension_numbers<[1], [0], [0], [1], [0, 0, 1, 1], [], []>} : vector<8x32xf32>, vector<32x32xf32>, vector<8x32xf32> -> vector<8x32xf32>
    %cst_26 = arith.constant dense<0.000000e+00> : vector<8x32xf32>
    %55 = tpu.matmul %43, %9, %cst_26 {dimension_numbers = #tpu.dot_dimension_numbers<[1], [0], [0], [1], [0, 0, 1, 1], [], []>} : vector<8x32xf32>, vector<32x32xf32>, vector<8x32xf32> -> vector<8x32xf32>
    %56 = arith.addf %54, %55 : vector<8x32xf32>
    %57 = vector.broadcast %15 : vector<1x32xf32> to vector<8x32xf32>
    %58 = arith.addf %56, %57 : vector<8x32xf32>
    %59 = tpu.concatenate %58, %38, %43, %48, %53 in 0 : vector<8x32xf32>, vector<8x32xf32>, vector<8x32xf32>, vector<8x32xf32>, vector<8x32xf32> -> vector<40x32xf32>
    %60 = arith.mulf %59, %59 : vector<40x32xf32>
    %cst_27 = arith.constant dense<0.000000e+00> : vector<40xf32>
    %61 = vector.multi_reduction <add>, %60, %cst_27 [1] : vector<40x32xf32> to vector<40xf32>
    %62 = vector.shape_cast %61 : vector<40xf32> to vector<40x1xf32>
    %cst_28 = arith.constant 1.000000e-24 : f32
    %63 = vector.broadcast %cst_28 : f32 to vector<40x1xf32>
    %64 = arith.maximumf %62, %63 : vector<40x1xf32>
    %65 = math.rsqrt %64 : vector<40x1xf32>
    %cst_29 = arith.constant dense<0.000000e+00> : vector<40x6xf32>
    %66 = tpu.matmul %59, %11, %cst_29 {dimension_numbers = #tpu.dot_dimension_numbers<[1], [0], [0], [1], [0, 0, 1, 1], [], []>} : vector<40x32xf32>, vector<32x6xf32>, vector<40x6xf32> -> vector<40x6xf32>
    %67 = vector.broadcast %65 : vector<40x1xf32> to vector<40x6xf32>
    %68 = arith.mulf %66, %67 : vector<40x6xf32>
    %cst_30 = arith.constant 2.000000e+01 : f32
    %69 = vector.broadcast %cst_30 : f32 to vector<40x6xf32>
    %70 = arith.mulf %68, %69 : vector<40x6xf32>
    %c0_31 = arith.constant 0 : index
    %c0_32 = arith.constant 0 : index
    %71 = vector.load %arg2[%c0_31, %c0_32] : memref<40x9xf32, #tpu.memory_space<vmem>>, vector<40x9xf32>
    %72 = vector.extract_strided_slice %71 {offsets = [0, 0], sizes = [40, 6], strides = [1, 1]} : vector<40x9xf32> to vector<40x6xf32>
    %73 = vector.extract_strided_slice %71 {offsets = [0, 6], sizes = [40, 1], strides = [1, 1]} : vector<40x9xf32> to vector<40x1xf32>
    %74 = vector.extract_strided_slice %71 {offsets = [0, 7], sizes = [40, 1], strides = [1, 1]} : vector<40x9xf32> to vector<40x1xf32>
    %75 = vector.extract_strided_slice %71 {offsets = [0, 8], sizes = [40, 1], strides = [1, 1]} : vector<40x9xf32> to vector<40x1xf32>
    %cst_33 = arith.constant dense<0xFF800000> : vector<40xf32>
    %76 = vector.multi_reduction <maximumf>, %70, %cst_33 [1] : vector<40x6xf32> to vector<40xf32>
    %77 = vector.shape_cast %76 : vector<40xf32> to vector<40x1xf32>
    %78 = vector.broadcast %77 : vector<40x1xf32> to vector<40x6xf32>
    %79 = arith.subf %70, %78 : vector<40x6xf32>
    %80 = math.exp %79 : vector<40x6xf32>
    %cst_34 = arith.constant dense<0.000000e+00> : vector<40xf32>
    %81 = vector.multi_reduction <add>, %80, %cst_34 [1] : vector<40x6xf32> to vector<40xf32>
    %82 = vector.shape_cast %81 : vector<40xf32> to vector<40x1xf32>
    %83 = math.log %82 : vector<40x1xf32>
    %84 = arith.addf %77, %83 : vector<40x1xf32>
    %85 = arith.mulf %70, %72 : vector<40x6xf32>
    %cst_35 = arith.constant dense<0.000000e+00> : vector<40xf32>
    %86 = vector.multi_reduction <add>, %85, %cst_35 [1] : vector<40x6xf32> to vector<40xf32>
    %87 = vector.shape_cast %86 : vector<40xf32> to vector<40x1xf32>
    %88 = arith.subf %84, %87 : vector<40x1xf32>
    %89 = arith.mulf %88, %74 : vector<40x1xf32>
    %90 = vector.shape_cast %89 : vector<40x1xf32> to vector<1x40x1xf32>
    %cst_36 = arith.constant dense<0.000000e+00> : vector<1xf32>
    %91 = vector.multi_reduction <add>, %90, %cst_36 [1, 2] : vector<1x40x1xf32> to vector<1xf32>
    %92 = vector.shape_cast %91 : vector<1xf32> to vector<1x1x1xf32>
    %93 = vector.extract %92[0, 0, 0] : f32 from vector<1x1x1xf32>
    %94 = vector.broadcast %93 : f32 to vector<1x1xf32>
    %95 = tpu.iota {dimensions = array<i32: 1>} : vector<40x6xi32>
    %96 = arith.sitofp %95 : vector<40x6xi32> to vector<40x6xf32>
    %97 = vector.broadcast %77 : vector<40x1xf32> to vector<40x6xf32>
    %98 = arith.cmpf oeq, %70, %97 : vector<40x6xf32>
    %cst_37 = arith.constant 6.000000e+00 : f32
    %99 = vector.broadcast %cst_37 : f32 to vector<40x6xf32>
    %100 = arith.select %98, %96, %99 : vector<40x6xi1>, vector<40x6xf32>
    %cst_38 = arith.constant dense<0x7F800000> : vector<40xf32>
    %101 = vector.multi_reduction <minimumf>, %100, %cst_38 [1] : vector<40x6xf32> to vector<40xf32>
    %102 = vector.shape_cast %101 : vector<40xf32> to vector<40x1xf32>
    %103 = arith.cmpf oeq, %102, %73 : vector<40x1xf32>
    %104 = arith.extui %103 : vector<40x1xi1> to vector<40x1xi32>
    %105 = arith.sitofp %104 : vector<40x1xi32> to vector<40x1xf32>
    %106 = arith.mulf %105, %75 : vector<40x1xf32>
    %107 = vector.shape_cast %106 : vector<40x1xf32> to vector<1x40x1xf32>
    %cst_39 = arith.constant dense<0.000000e+00> : vector<1xf32>
    %108 = vector.multi_reduction <add>, %107, %cst_39 [1, 2] : vector<1x40x1xf32> to vector<1xf32>
    %109 = vector.shape_cast %108 : vector<1xf32> to vector<1x1x1xf32>
    %110 = vector.extract %109[0, 0, 0] : f32 from vector<1x1x1xf32>
    %111 = vector.broadcast %110 : f32 to vector<1x1xf32>
    %c0_40 = arith.constant 0 : index
    %c0_41 = arith.constant 0 : index
    %112 = vector.load %arg3[%c0_40, %c0_41] : memref<32x32xf32, #tpu.memory_space<vmem>>, vector<8x32xf32>
    tpu.vector_store %arg3[%c0_40, %c0_41], %58 {strides = array<i32>} : memref<32x32xf32, #tpu.memory_space<vmem>>, vector<8x32xf32>,
    %c8 = arith.constant 8 : index
    %c0_42 = arith.constant 0 : index
    %113 = vector.load %arg3[%c8, %c0_42] : memref<32x32xf32, #tpu.memory_space<vmem>>, vector<8x32xf32>
    tpu.vector_store %arg3[%c8, %c0_42], %48 {strides = array<i32>} : memref<32x32xf32, #tpu.memory_space<vmem>>, vector<8x32xf32>,
    %c16 = arith.constant 16 : index
    %c0_43 = arith.constant 0 : index
    %114 = vector.load %arg3[%c16, %c0_43] : memref<32x32xf32, #tpu.memory_space<vmem>>, vector<8x32xf32>
    tpu.vector_store %arg3[%c16, %c0_43], %53 {strides = array<i32>} : memref<32x32xf32, #tpu.memory_space<vmem>>, vector<8x32xf32>,
    %115 = tpu.iota {dimensions = array<i32: 0>} : vector<8x32xi32>
    %c0_i32 = arith.constant 0 : i32
    %116 = vector.broadcast %c0_i32 : i32 to vector<8x32xi32>
    %117 = arith.cmpi eq, %115, %116 : vector<8x32xi32>
    %c1_i32 = arith.constant 1 : i32
    %118 = vector.broadcast %c1_i32 : i32 to vector<8x32xi32>
    %119 = arith.cmpi eq, %115, %118 : vector<8x32xi32>
    %cst_44 = arith.constant 0.000000e+00 : f32
    %120 = vector.shape_cast %111 : vector<1x1xf32> to vector<1x1xf32>
    %121 = vector.broadcast %120 : vector<1x1xf32> to vector<8x32xf32>
    %122 = vector.broadcast %cst_44 : f32 to vector<8x32xf32>
    %123 = arith.select %119, %121, %122 : vector<8x32xi1>, vector<8x32xf32>
    %124 = vector.shape_cast %94 : vector<1x1xf32> to vector<1x1xf32>
    %125 = vector.broadcast %124 : vector<1x1xf32> to vector<8x32xf32>
    %126 = arith.select %117, %125, %123 : vector<8x32xi1>, vector<8x32xf32>
    %c24 = arith.constant 24 : index
    %c0_45 = arith.constant 0 : index
    %127 = vector.load %arg3[%c24, %c0_45] : memref<32x32xf32, #tpu.memory_space<vmem>>, vector<8x32xf32>
    tpu.vector_store %arg3[%c24, %c0_45], %126 {strides = array<i32>} : memref<32x32xf32, #tpu.memory_space<vmem>>, vector<8x32xf32>,
    return
  }
}

</mosaic_0001>

<llo_original>
// kernel: _forward_core.1
$region0: #{_forward_core.1}
  #allocation0 [shape = 'u32[]', space=smem, size = 0x4, offset = 0x4, fixed_abs, tag = 'smem constant byte address 0x4 - core index']
  #allocation1 [shape = 'u32[72,128]{1,0:T(1,128)}', space=vmem, size = 0x9000, scoped, tag = 'internal scratch']
  %s0 = inlined_call_operand.vmem [shape: f32[96,32], index: 0, kind: input, shape index: {}]
  %s1 = inlined_call_operand.vmem [shape: f32[227,64], index: 1, kind: input, shape index: {}]
  %s2 = inlined_call_operand.vmem [shape: f32[40,9], index: 2, kind: input, shape index: {}]
  %s3 = inlined_call_operand.vmem [shape: f32[32,32], index: 3, kind: output, shape index: {}]
  %s4 = sld [smem:[#allocation0]]
  $region22: #{_forward_core.1} parent=0
    _
  %s6 = ssub.s32 1, %s4
  %s7 = scalar_select 0, %s6, %s4
  // Predicated region
  $region2: #{_forward_core.1} parent=0 // pred_check
    _
  $region3: #{_forward_core.1} parent=0 // pred_check_branch
    %9 = sbr.rel (0) target = $region5
  $region4: #{_forward_core.1} parent=0 // pred_region
    _
  $region5: #{_forward_core.1} parent=0 // pred_fallthru
    _
  // Predicated region
  $region6: #{_forward_core.1} parent=0 // pred_check
    _
  $region7: #{_forward_core.1} parent=0 // pred_check_branch
    %11 = sbr.rel (0) target = $region9
  $region8: #{_forward_core.1} parent=0 // pred_region
    _
  $region9: #{_forward_core.1} parent=0 // pred_fallthru
    _
  // Predicated region
  $region10: #{_forward_core.1} parent=0 // pred_check
    _
  $region11: #{_forward_core.1} parent=0 // pred_check_branch
    %13 = sbr.rel (0) target = $region13
  $region12: #{_forward_core.1} parent=0 // pred_region
    _
  $region13: #{_forward_core.1} parent=0 // pred_fallthru
    _
  %v14 = vld [vmem:[%s0] sm:$0xff]
  %v15 = vld [vmem:[%s0 + $0x8] sm:$0xff]
  %v16 = vld [vmem:[%s0 + $0x10] sm:$0xff]
  %v17 = vld [vmem:[%s0 + $0x18] sm:$0xff]
  %v18 = vld [vmem:[%s0 + $0x20] sm:$0xff]
  %v19 = vld [vmem:[%s0 + $0x28] sm:$0xff]
  %v20 = vld [vmem:[%s0 + $0x30] sm:$0xff]
  %v21 = vld [vmem:[%s0 + $0x38] sm:$0xff]
  %v22 = vld [vmem:[%s0 + $0x40] sm:$0xff]
  %v23 = vld [vmem:[%s0 + $0x48] sm:$0xff]
  %v24 = vld [vmem:[%s0 + $0x50] sm:$0xff]
  %v25 = vld [vmem:[%s0 + $0x58] sm:$0xff]
  %v26 = vld [vmem:[%s1] sm:$0xff]
  %v27 = vld [vmem:[%s1 + $0x8] sm:$0xff]
  %v28 = vld [vmem:[%s1 + $0x10] sm:$0xff]
  %v29 = vld [vmem:[%s1 + $0x18] sm:$0xff]
  %v30 = vld [vmem:[%s1 + $0x20] sm:$0xff]
  %v31 = vld [vmem:[%s1 + $0x28] sm:$0xff]
  %v32 = vld [vmem:[%s1 + $0x30] sm:$0xff]
  %v33 = vld [vmem:[%s1 + $0x38] sm:$0xff]
  %v34 = vld [vmem:[%s1 + $0x40] sm:$0xff]
  %v35 = vld [vmem:[%s1 + $0x48] sm:$0xff]
  %v36 = vld [vmem:[%s1 + $0x50] sm:$0xff]
  %v37 = vld [vmem:[%s1 + $0x58] sm:$0xff]
  %v38 = vld [vmem:[%s1 + $0x60] sm:$0xff]
  %v39 = vld [vmem:[%s1 + $0x68] sm:$0xff]
  %v40 = vld [vmem:[%s1 + $0x70] sm:$0xff]
  %v41 = vld [vmem:[%s1 + $0x78] sm:$0xff]
  %v42 = vld [vmem:[%s1 + $0x80] sm:$0xff]
  %v43 = vld [vmem:[%s1 + $0x88] sm:$0xff]
  %v44 = vld [vmem:[%s1 + $0x90] sm:$0xff]
  %v45 = vld [vmem:[%s1 + $0x98] sm:$0xff]
  %v46 = vld [vmem:[%s1 + $0xa0] sm:$0xff]
  %v47 = vld [vmem:[%s1 + $0xa8] sm:$0xff]
  %v48 = vld [vmem:[%s1 + $0xb0] sm:$0xff]
  %v49 = vld [vmem:[%s1 + $0xb8] sm:$0xff]
  %v50 = vld [vmem:[%s1 + $0xc0] sm:$0xff]
  %v51 = vld [vmem:[%s1 + $0xc8] sm:$0xff]
  %v52 = vld [vmem:[%s1 + $0xd0] sm:$0xff]
  %v53 = vld [vmem:[%s1 + $0xd8] sm:$0xff]
  %v54 = vld [vmem:[%s1 + $0xe0] sm:$0x1]
  %v55 = vld [vmem:[%s1 + $0xe1] sm:$0x1]
  %v56 = vld [vmem:[%s1 + $0xe2] sm:$0x1]
  %vm57 = vcmask 261120
  %v59 = vsel %vm57, %v14, 0
  %v62 = vsel %vm57, %v15, 0
  %v65 = vsel %vm57, %v16, 0
  %v68 = vsel %vm57, %v17, 0
  %70 = vmatpush.msra.mxu0 0.0
  %71 = vmatpush.msra.mxu0 0.0
  %72 = vmatpush.msra.mxu0 0.0
  %73 = vmatpush.msra.mxu0 0.0
  %74 = vmatpush.msra.mxu0 0.0
  %75 = vmatpush.msra.mxu0 0.0
  %76 = vmatpush.msra.mxu0 0.0
  %77 = vmatpush.msra.mxu0 0.0
  %78 = vmatpush.msra.mxu0 0.0
  %79 = vmatpush.msra.mxu0 0.0
  %80 = vmatpush.msra.mxu0 0.0
  %81 = vmatpush.msra.mxu0 0.0
  %82 = vmatpush.msra.mxu0 %v29
  %83 = vmatpush.msra.mxu0 %v28
  %84 = vmatpush.msra.mxu0 %v27
  %85 = vmatpush.msra.mxu0 %v26
  %86 = vmatmul.f32.gmra.mxu0 %v59
  %v87 = vpop.f32.mrf.mxu0
  %v88 = vadd.f32 0.0, %v87
  %89 = vmatmul.f32.gmra.mxu0 %v62
  %v90 = vpop.f32.mrf.mxu0
  %v91 = vadd.f32 0.0, %v90
  %92 = vmatmul.f32.gmra.mxu0 %v65
  %v93 = vpop.f32.mrf.mxu0
  %v94 = vadd.f32 0.0, %v93
  %95 = vmatmul.f32.gmra.mxu0 %v68
  %v96 = vpop.f32.mrf.mxu0
  %v97 = vadd.f32 0.0, %v96
  %98 = vdwg.mxu0
  %v100 = vsel %vm57, %v18, 0
  %v103 = vsel %vm57, %v19, 0
  %v106 = vsel %vm57, %v20, 0
  %v109 = vsel %vm57, %v21, 0
  %v112 = vsel %vm57, %v22, 0
  %v115 = vsel %vm57, %v23, 0
  %v118 = vsel %vm57, %v24, 0
  %v121 = vsel %vm57, %v25, 0
  %123 = vmatpush.msra.mxu0 0.0
  %124 = vmatpush.msra.mxu0 0.0
  %125 = vmatpush.msra.mxu0 0.0
  %126 = vmatpush.msra.mxu0 0.0
  %127 = vmatpush.msra.mxu0 0.0
  %128 = vmatpush.msra.mxu0 0.0
  %129 = vmatpush.msra.mxu0 0.0
  %130 = vmatpush.msra.mxu0 0.0
  %131 = vmatpush.msra.mxu0 0.0
  %132 = vmatpush.msra.mxu0 0.0
  %133 = vmatpush.msra.mxu0 0.0
  %134 = vmatpush.msra.mxu0 0.0
  %135 = vmatpush.msra.mxu0 %v33
  %136 = vmatpush.msra.mxu0 %v32
  %137 = vmatpush.msra.mxu0 %v31
  %138 = vmatpush.msra.mxu0 %v30
  %139 = vmatmul.f32.gmra.mxu0 %v100
  %v140 = vpop.f32.mrf.mxu0
  %v141 = vadd.f32 0.0, %v140
  %142 = vmatmul.f32.gmra.mxu0 %v103
  %v143 = vpop.f32.mrf.mxu0
  %v144 = vadd.f32 0.0, %v143
  %145 = vmatmul.f32.gmra.mxu0 %v106
  %v146 = vpop.f32.mrf.mxu0
  %v147 = vadd.f32 0.0, %v146
  %148 = vmatmul.f32.gmra.mxu0 %v109
  %v149 = vpop.f32.mrf.mxu0
  %v150 = vadd.f32 0.0, %v149
  %151 = vmatmul.f32.gmra.mxu0 %v112
  %v152 = vpop.f32.mrf.mxu0
  %v153 = vadd.f32 0.0, %v152
  %154 = vmatmul.f32.gmra.mxu0 %v115
  %v155 = vpop.f32.mrf.mxu0
  %v156 = vadd.f32 0.0, %v155
  %157 = vmatmul.f32.gmra.mxu0 %v118
  %v158 = vpop.f32.mrf.mxu0
  %v159 = vadd.f32 0.0, %v158
  %160 = vmatmul.f32.gmra.mxu0 %v121
  %v161 = vpop.f32.mrf.mxu0
  %v162 = vadd.f32 0.0, %v161
  %163 = vdwg.mxu0
  %v164 = vadd.f32 %v88, %v141
  %v165 = vadd.f32 %v91, %v144
  %v166 = vadd.f32 %v94, %v147
  %v167 = vadd.f32 %v97, %v150
  %v168 = vadd.f32 %v88, %v153
  %v169 = vadd.f32 %v91, %v156
  %v170 = vadd.f32 %v94, %v159
  %v171 = vadd.f32 %v97, %v162
  %v172 = vperm.slane %v54, 0
  %v173 = vadd.f32 %v164, %v172
  %v174 = vadd.f32 %v165, %v172
  %v175 = vadd.f32 %v166, %v172
  %v176 = vadd.f32 %v167, %v172
  %v177 = vadd.f32 %v168, %v172
  %v178 = vadd.f32 %v169, %v172
  %v179 = vadd.f32 %v170, %v172
  %v180 = vadd.f32 %v171, %v172
  %v181 = vmax.f32 %v173, 0.0
  %v182 = vmax.f32 %v174, 0.0
  %v183 = vmax.f32 %v175, 0.0
  %v184 = vmax.f32 %v176, 0.0
  %v185 = vmax.f32 %v177, 0.0
  %v186 = vmax.f32 %v178, 0.0
  %v187 = vmax.f32 %v179, 0.0
  %v188 = vmax.f32 %v180, 0.0
  %v189 = vperm.slane %v55, 0
  %vm190 = vcmask 523264
  %v192 = vsel %vm190, %v181, 0
  %v195 = vsel %vm190, %v182, 0
  %v198 = vsel %vm190, %v183, 0
  %v201 = vsel %vm190, %v184, 0
  %v204 = vsel %vm190, %v185, 0
  %v207 = vsel %vm190, %v186, 0
  %v210 = vsel %vm190, %v187, 0
  %v213 = vsel %vm190, %v188, 0
  %215 = vmatpush.msra.mxu0 0.0
  %216 = vmatpush.msra.mxu0 0.0
  %217 = vmatpush.msra.mxu0 0.0
  %218 = vmatpush.msra.mxu0 0.0
  %219 = vmatpush.msra.mxu0 0.0
  %220 = vmatpush.msra.mxu0 0.0
  %221 = vmatpush.msra.mxu0 0.0
  %222 = vmatpush.msra.mxu0 0.0
  %223 = vmatpush.msra.mxu0 %v41
  %224 = vmatpush.msra.mxu0 %v40
  %225 = vmatpush.msra.mxu0 %v39
  %226 = vmatpush.msra.mxu0 %v38
  %227 = vmatpush.msra.mxu0 %v37
  %228 = vmatpush.msra.mxu0 %v36
  %229 = vmatpush.msra.mxu0 %v35
  %230 = vmatpush.msra.mxu0 %v34
  %231 = vmatmul.f32.gmra.mxu0 %v192
  %v232 = vpop.f32.mrf.mxu0
  %v233 = vadd.f32 %v189, %v232
  %234 = vmatmul.f32.gmra.mxu0 %v195
  %v235 = vpop.f32.mrf.mxu0
  %v236 = vadd.f32 %v189, %v235
  %237 = vmatmul.f32.gmra.mxu0 %v198
  %v238 = vpop.f32.mrf.mxu0
  %v239 = vadd.f32 %v189, %v238
  %240 = vmatmul.f32.gmra.mxu0 %v201
  %v241 = vpop.f32.mrf.mxu0
  %v242 = vadd.f32 %v189, %v241
  %243 = vmatmul.f32.gmra.mxu0 %v204
  %v244 = vpop.f32.mrf.mxu0
  %v245 = vadd.f32 %v189, %v244
  %246 = vmatmul.f32.gmra.mxu0 %v207
  %v247 = vpop.f32.mrf.mxu0
  %v248 = vadd.f32 %v189, %v247
  %249 = vmatmul.f32.gmra.mxu0 %v210
  %v250 = vpop.f32.mrf.mxu0
  %v251 = vadd.f32 %v189, %v250
  %252 = vmatmul.f32.gmra.mxu0 %v213
  %v253 = vpop.f32.mrf.mxu0
  %v254 = vadd.f32 %v189, %v253
  %255 = vdwg.mxu0
  %v256 = vxor.u32 %v233, 2147483648
  %v257 = vxor.u32 %v236, 2147483648
  %v258 = vxor.u32 %v239, 2147483648
  %v259 = vxor.u32 %v242, 2147483648
  %v260 = vxor.u32 %v245, 2147483648
  %v261 = vxor.u32 %v248, 2147483648
  %v262 = vxor.u32 %v251, 2147483648
  %v263 = vxor.u32 %v254, 2147483648
  %v264 = vmul.f32 %v256, 1.442695
  %v265 = vpow.pop %v264
  %v266 = vmul.f32 %v257, 1.442695
  %v267 = vpow.pop %v266
  %v268 = vmul.f32 %v258, 1.442695
  %v269 = vpow.pop %v268
  %v270 = vmul.f32 %v259, 1.442695
  %v271 = vpow.pop %v270
  %v272 = vmul.f32 %v260, 1.442695
  %v273 = vpow.pop %v272
  %v274 = vmul.f32 %v261, 1.442695
  %v275 = vpow.pop %v274
  %v276 = vmul.f32 %v262, 1.442695
  %v277 = vpow.pop %v276
  %v278 = vmul.f32 %v263, 1.442695
  %v279 = vpow.pop %v278
  %v280 = vadd.f32 %v265, 1.0
  %v281 = vadd.f32 %v267, 1.0
  %v282 = vadd.f32 %v269, 1.0
  %v283 = vadd.f32 %v271, 1.0
  %v284 = vadd.f32 %v273, 1.0
  %v285 = vadd.f32 %v275, 1.0
  %v286 = vadd.f32 %v277, 1.0
  %v287 = vadd.f32 %v279, 1.0
  %v288 = vrcp.pop %v280
  %v289 = vmul.f32 %v280, %v288
  %v290 = vsub.f32 1.0, %v289
  %v291 = vmul.f32 %v288, %v290
  %v292 = vadd.f32 %v288, %v291
  %vm293 = vweird.f32 %v280
  %vm294 = vweird.f32 %v288
  %vm295 = vmor %vm293, %vm294
  %v296 = vsel %vm295, %v288, %v292
  %v297 = vand.u32 2147483647, %v280
  %vm298 = vcmp.eq.f32.partialorder %v297, 8.507059e+37
  %v299 = vand.u32 %v280, 2147483648
  %v300 = vor.u32 1.1754944e-38, %v299
  %v301 = vsel %vm298, %v300, %v296
  %v302 = vmul.f32 1.0, %v301
  %v303 = vrcp.pop %v281
  %v304 = vmul.f32 %v281, %v303
  %v305 = vsub.f32 1.0, %v304
  %v306 = vmul.f32 %v303, %v305
  %v307 = vadd.f32 %v303, %v306
  %vm308 = vweird.f32 %v281
  %vm309 = vweird.f32 %v303
  %vm310 = vmor %vm308, %vm309
  %v311 = vsel %vm310, %v303, %v307
  %v312 = vand.u32 2147483647, %v281
  %vm313 = vcmp.eq.f32.partialorder %v312, 8.507059e+37
  %v314 = vand.u32 %v281, 2147483648
  %v315 = vor.u32 1.1754944e-38, %v314
  %v316 = vsel %vm313, %v315, %v311
  %v317 = vmul.f32 1.0, %v316
  %v318 = vrcp.pop %v282
  %v319 = vmul.f32 %v282, %v318
  %v320 = vsub.f32 1.0, %v319
  %v321 = vmul.f32 %v318, %v320
  %v322 = vadd.f32 %v318, %v321
  %vm323 = vweird.f32 %v282
  %vm324 = vweird.f32 %v318
  %vm325 = vmor %vm323, %vm324
  %v326 = vsel %vm325, %v318, %v322
  %v327 = vand.u32 2147483647, %v282
  %vm328 = vcmp.eq.f32.partialorder %v327, 8.507059e+37
  %v329 = vand.u32 %v282, 2147483648
  %v330 = vor.u32 1.1754944e-38, %v329
  %v331 = vsel %vm328, %v330, %v326
  %v332 = vmul.f32 1.0, %v331
  %v333 = vrcp.pop %v283
  %v334 = vmul.f32 %v283, %v333
  %v335 = vsub.f32 1.0, %v334
  %v336 = vmul.f32 %v333, %v335
  %v337 = vadd.f32 %v333, %v336
  %vm338 = vweird.f32 %v283
  %vm339 = vweird.f32 %v333
  %vm340 = vmor %vm338, %vm339
  %v341 = vsel %vm340, %v333, %v337
  %v342 = vand.u32 2147483647, %v283
  %vm343 = vcmp.eq.f32.partialorder %v342, 8.507059e+37
  %v344 = vand.u32 %v283, 2147483648
  %v345 = vor.u32 1.1754944e-38, %v344
  %v346 = vsel %vm343, %v345, %v341
  %v347 = vmul.f32 1.0, %v346
  %v348 = vrcp.pop %v284
  %v349 = vmul.f32 %v284, %v348
  %v350 = vsub.f32 1.0, %v349
  %v351 = vmul.f32 %v348, %v350
  %v352 = vadd.f32 %v348, %v351
  %vm353 = vweird.f32 %v284
  %vm354 = vweird.f32 %v348
  %vm355 = vmor %vm353, %vm354
  %v356 = vsel %vm355, %v348, %v352
  %v357 = vand.u32 2147483647, %v284
  %vm358 = vcmp.eq.f32.partialorder %v357, 8.507059e+37
  %v359 = vand.u32 %v284, 2147483648
  %v360 = vor.u32 1.1754944e-38, %v359
  %v361 = vsel %vm358, %v360, %v356
  %v362 = vmul.f32 1.0, %v361
  %v363 = vrcp.pop %v285
  %v364 = vmul.f32 %v285, %v363
  %v365 = vsub.f32 1.0, %v364
  %v366 = vmul.f32 %v363, %v365
  %v367 = vadd.f32 %v363, %v366
  %vm368 = vweird.f32 %v285
  %vm369 = vweird.f32 %v363
  %vm370 = vmor %vm368, %vm369
  %v371 = vsel %vm370, %v363, %v367
  %v372 = vand.u32 2147483647, %v285
  %vm373 = vcmp.eq.f32.partialorder %v372, 8.507059e+37
  %v374 = vand.u32 %v285, 2147483648
  %v375 = vor.u32 1.1754944e-38, %v374
  %v376 = vsel %vm373, %v375, %v371
  %v377 = vmul.f32 1.0, %v376
  %v378 = vrcp.pop %v286
  %v379 = vmul.f32 %v286, %v378
  %v380 = vsub.f32 1.0, %v379
  %v381 = vmul.f32 %v378, %v380
  %v382 = vadd.f32 %v378, %v381
  %vm383 = vweird.f32 %v286
  %vm384 = vweird.f32 %v378
  %vm385 = vmor %vm383, %vm384
  %v386 = vsel %vm385, %v378, %v382
  %v387 = vand.u32 2147483647, %v286
  %vm388 = vcmp.eq.f32.partialorder %v387, 8.507059e+37
  %v389 = vand.u32 %v286, 2147483648
  %v390 = vor.u32 1.1754944e-38, %v389
  %v391 = vsel %vm388, %v390, %v386
  %v392 = vmul.f32 1.0, %v391
  %v393 = vrcp.pop %v287
  %v394 = vmul.f32 %v287, %v393
  %v395 = vsub.f32 1.0, %v394
  %v396 = vmul.f32 %v393, %v395
  %v397 = vadd.f32 %v393, %v396
  %vm398 = vweird.f32 %v287
  %vm399 = vweird.f32 %v393
  %vm400 = vmor %vm398, %vm399
  %v401 = vsel %vm400, %v393, %v397
  %v402 = vand.u32 2147483647, %v287
  %vm403 = vcmp.eq.f32.partialorder %v402, 8.507059e+37
  %v404 = vand.u32 %v287, 2147483648
  %v405 = vor.u32 1.1754944e-38, %v404
  %v406 = vsel %vm403, %v405, %v401
  %v407 = vmul.f32 1.0, %v406
  %v408 = vmul.f32 %v302, %v14
  %v409 = vmul.f32 %v317, %v15
  %v410 = vmul.f32 %v332, %v16
  %v411 = vmul.f32 %v347, %v17
  %v412 = vmul.f32 %v362, %v14
  %v413 = vmul.f32 %v377, %v15
  %v414 = vmul.f32 %v392, %v16
  %v415 = vmul.f32 %v407, %v17
  %v416 = vsel %vm57, %v408, 0.0
  %v417 = vrot.slane %v416, 4
  %v418 = vadd.f32 %v416, %v417
  %v419 = vrot.slane %v418, 2
  %v420 = vadd.f32 %v418, %v419
  %v421 = vrot.slane %v420, 1
  %v422 = vadd.f32 %v420, %v421
  %v423 = vsel %vm57, %v409, 0.0
  %v424 = vrot.slane %v423, 4
  %v425 = vadd.f32 %v423, %v424
  %v426 = vrot.slane %v425, 2
  %v427 = vadd.f32 %v425, %v426
  %v428 = vrot.slane %v427, 1
  %v429 = vadd.f32 %v427, %v428
  %v430 = vsel %vm57, %v410, 0.0
  %v431 = vrot.slane %v430, 4
  %v432 = vadd.f32 %v430, %v431
  %v433 = vrot.slane %v432, 2
  %v434 = vadd.f32 %v432, %v433
  %v435 = vrot.slane %v434, 1
  %v436 = vadd.f32 %v434, %v435
  %v437 = vsel %vm57, %v411, 0.0
  %v438 = vrot.slane %v437, 4
  %v439 = vadd.f32 %v437, %v438
  %v440 = vrot.slane %v439, 2
  %v441 = vadd.f32 %v439, %v440
  %v442 = vrot.slane %v441, 1
  %v443 = vadd.f32 %v441, %v442
  %v444 = vsel %vm57, %v412, 0.0
  %v445 = vrot.slane %v444, 4
  %v446 = vadd.f32 %v444, %v445
  %v447 = vrot.slane %v446, 2
  %v448 = vadd.f32 %v446, %v447
  %v449 = vrot.slane %v448, 1
  %v450 = vadd.f32 %v448, %v449
  %v451 = vsel %vm57, %v413, 0.0
  %v452 = vrot.slane %v451, 4
  %v453 = vadd.f32 %v451, %v452
  %v454 = vrot.slane %v453, 2
  %v455 = vadd.f32 %v453, %v454
  %v456 = vrot.slane %v455, 1
  %v457 = vadd.f32 %v455, %v456
  %v458 = vsel %vm57, %v414, 0.0
  %v459 = vrot.slane %v458, 4
  %v460 = vadd.f32 %v458, %v459
  %v461 = vrot.slane %v460, 2
  %v462 = vadd.f32 %v460, %v461
  %v463 = vrot.slane %v462, 1
  %v464 = vadd.f32 %v462, %v463
  %v465 = vsel %vm57, %v415, 0.0
  %v466 = vrot.slane %v465, 4
  %v467 = vadd.f32 %v465, %v466
  %v468 = vrot.slane %v467, 2
  %v469 = vadd.f32 %v467, %v468
  %v470 = vrot.slane %v469, 1
  %v471 = vadd.f32 %v469, %v470
  %v472 = vmul.f32 %v422, 0.125
  %v473 = vmul.f32 %v429, 0.125
  %v474 = vmul.f32 %v436, 0.125
  %v475 = vmul.f32 %v443, 0.125
  %v476 = vmul.f32 %v450, 0.125
  %v477 = vmul.f32 %v457, 0.125
  %v478 = vmul.f32 %v464, 0.125
  %v479 = vmul.f32 %v471, 0.125
  %480 = vrot.lane.b32.xlu0 %v18, 32
  %v481 = vpop.permute.xlu0 %480
  %482 = vrot.lane.b32.xlu0 %v19, 32
  %v483 = vpop.permute.xlu0 %482
  %484 = vrot.lane.b32.xlu0 %v20, 32
  %v485 = vpop.permute.xlu0 %484
  %486 = vrot.lane.b32.xlu0 %v21, 32
  %v487 = vpop.permute.xlu0 %486
  %488 = vrot.lane.b32.xlu0 %v22, 32
  %v489 = vpop.permute.xlu0 %488
  %490 = vrot.lane.b32.xlu0 %v23, 32
  %v491 = vpop.permute.xlu0 %490
  %492 = vrot.lane.b32.xlu0 %v24, 32
  %v493 = vpop.permute.xlu0 %492
  %494 = vrot.lane.b32.xlu0 %v25, 32
  %v495 = vpop.permute.xlu0 %494
  %v504 = vmul.f32 %v302, %v481
  %v505 = vmul.f32 %v317, %v483
  %v506 = vmul.f32 %v332, %v485
  %v507 = vmul.f32 %v347, %v487
  %v508 = vmul.f32 %v362, %v489
  %v509 = vmul.f32 %v377, %v491
  %v510 = vmul.f32 %v392, %v493
  %v511 = vmul.f32 %v407, %v495
  %vm512 = vcmask 523520
  %v513 = vsel %vm512, %v504, 0.0
  %v514 = vrot.slane %v513, 4
  %v515 = vadd.f32 %v513, %v514
  %v516 = vrot.slane %v515, 2
  %v517 = vadd.f32 %v515, %v516
  %v518 = vrot.slane %v517, 1
  %v519 = vadd.f32 %v517, %v518
  %v520 = vsel %vm512, %v505, 0.0
  %v521 = vrot.slane %v520, 4
  %v522 = vadd.f32 %v520, %v521
  %v523 = vrot.slane %v522, 2
  %v524 = vadd.f32 %v522, %v523
  %v525 = vrot.slane %v524, 1
  %v526 = vadd.f32 %v524, %v525
  %v527 = vsel %vm512, %v506, 0.0
  %v528 = vrot.slane %v527, 4
  %v529 = vadd.f32 %v527, %v528
  %v530 = vrot.slane %v529, 2
  %v531 = vadd.f32 %v529, %v530
  %v532 = vrot.slane %v531, 1
  %v533 = vadd.f32 %v531, %v532
  %v534 = vsel %vm512, %v507, 0.0
  %v535 = vrot.slane %v534, 4
  %v536 = vadd.f32 %v534, %v535
  %v537 = vrot.slane %v536, 2
  %v538 = vadd.f32 %v536, %v537
  %v539 = vrot.slane %v538, 1
  %v540 = vadd.f32 %v538, %v539
  %v541 = vsel %vm512, %v508, 0.0
  %v542 = vrot.slane %v541, 4
  %v543 = vadd.f32 %v541, %v542
  %v544 = vrot.slane %v543, 2
  %v545 = vadd.f32 %v543, %v544
  %v546 = vrot.slane %v545, 1
  %v547 = vadd.f32 %v545, %v546
  %v548 = vsel %vm512, %v509, 0.0
  %v549 = vrot.slane %v548, 4
  %v550 = vadd.f32 %v548, %v549
  %v551 = vrot.slane %v550, 2
  %v552 = vadd.f32 %v550, %v551
  %v553 = vrot.slane %v552, 1
  %v554 = vadd.f32 %v552, %v553
  %v555 = vsel %vm512, %v510, 0.0
  %v556 = vrot.slane %v555, 4
  %v557 = vadd.f32 %v555, %v556
  %v558 = vrot.slane %v557, 2
  %v559 = vadd.f32 %v557, %v558
  %v560 = vrot.slane %v559, 1
  %v561 = vadd.f32 %v559, %v560
  %v562 = vsel %vm512, %v511, 0.0
  %v563 = vrot.slane %v562, 4
  %v564 = vadd.f32 %v562, %v563
  %v565 = vrot.slane %v564, 2
  %v566 = vadd.f32 %v564, %v565
  %v567 = vrot.slane %v566, 1
  %v568 = vadd.f32 %v566, %v567
  %v569 = vmul.f32 %v519, 0.125
  %v570 = vmul.f32 %v526, 0.125
  %v571 = vmul.f32 %v533, 0.125
  %v572 = vmul.f32 %v540, 0.125
  %v573 = vmul.f32 %v547, 0.125
  %v574 = vmul.f32 %v554, 0.125
  %v575 = vmul.f32 %v561, 0.125
  %v576 = vmul.f32 %v568, 0.125
  %v577 = vsel %vm57, %v14, 0.0
  %v578 = vrot.slane %v577, 4
  %v579 = vadd.f32 %v577, %v578
  %v580 = vrot.slane %v579, 2
  %v581 = vadd.f32 %v579, %v580
  %v582 = vrot.slane %v581, 1
  %v583 = vadd.f32 %v581, %v582
  %v584 = vsel %vm57, %v15, 0.0
  %v585 = vrot.slane %v584, 4
  %v586 = vadd.f32 %v584, %v585
  %v587 = vrot.slane %v586, 2
  %v588 = vadd.f32 %v586, %v587
  %v589 = vrot.slane %v588, 1
  %v590 = vadd.f32 %v588, %v589
  %v591 = vsel %vm57, %v16, 0.0
  %v592 = vrot.slane %v591, 4
  %v593 = vadd.f32 %v591, %v592
  %v594 = vrot.slane %v593, 2
  %v595 = vadd.f32 %v593, %v594
  %v596 = vrot.slane %v595, 1
  %v597 = vadd.f32 %v595, %v596
  %v598 = vsel %vm57, %v17, 0.0
  %v599 = vrot.slane %v598, 4
  %v600 = vadd.f32 %v598, %v599
  %v601 = vrot.slane %v600, 2
  %v602 = vadd.f32 %v600, %v601
  %v603 = vrot.slane %v602, 1
  %v604 = vadd.f32 %v602, %v603
  %v605 = vmul.f32 %v583, 0.125
  %v606 = vmul.f32 %v590, 0.125
  %v607 = vmul.f32 %v597, 0.125
  %v608 = vmul.f32 %v604, 0.125
  %v609 = vsub.f32 %v605, %v472
  %v610 = vsub.f32 %v606, %v473
  %v611 = vsub.f32 %v607, %v474
  %v612 = vsub.f32 %v608, %v475
  %v613 = vsub.f32 %v605, %v476
  %v614 = vsub.f32 %v606, %v477
  %v615 = vsub.f32 %v607, %v478
  %v616 = vsub.f32 %v608, %v479
  %v617 = vsel %vm57, %v18, 0.0
  %v618 = vrot.slane %v617, 4
  %v619 = vadd.f32 %v617, %v618
  %v620 = vrot.slane %v619, 2
  %v621 = vadd.f32 %v619, %v620
  %v622 = vrot.slane %v621, 1
  %v623 = vadd.f32 %v621, %v622
  %v624 = vsel %vm57, %v19, 0.0
  %v625 = vrot.slane %v624, 4
  %v626 = vadd.f32 %v624, %v625
  %v627 = vrot.slane %v626, 2
  %v628 = vadd.f32 %v626, %v627
  %v629 = vrot.slane %v628, 1
  %v630 = vadd.f32 %v628, %v629
  %v631 = vsel %vm57, %v20, 0.0
  %v632 = vrot.slane %v631, 4
  %v633 = vadd.f32 %v631, %v632
  %v634 = vrot.slane %v633, 2
  %v635 = vadd.f32 %v633, %v634
  %v636 = vrot.slane %v635, 1
  %v637 = vadd.f32 %v635, %v636
  %v638 = vsel %vm57, %v21, 0.0
  %v639 = vrot.slane %v638, 4
  %v640 = vadd.f32 %v638, %v639
  %v641 = vrot.slane %v640, 2
  %v642 = vadd.f32 %v640, %v641
  %v643 = vrot.slane %v642, 1
  %v644 = vadd.f32 %v642, %v643
  %v645 = vsel %vm57, %v22, 0.0
  %v646 = vrot.slane %v645, 4
  %v647 = vadd.f32 %v645, %v646
  %v648 = vrot.slane %v647, 2
  %v649 = vadd.f32 %v647, %v648
  %v650 = vrot.slane %v649, 1
  %v651 = vadd.f32 %v649, %v650
  %v652 = vsel %vm57, %v23, 0.0
  %v653 = vrot.slane %v652, 4
  %v654 = vadd.f32 %v652, %v653
  %v655 = vrot.slane %v654, 2
  %v656 = vadd.f32 %v654, %v655
  %v657 = vrot.slane %v656, 1
  %v658 = vadd.f32 %v656, %v657
  %v659 = vsel %vm57, %v24, 0.0
  %v660 = vrot.slane %v659, 4
  %v661 = vadd.f32 %v659, %v660
  %v662 = vrot.slane %v661, 2
  %v663 = vadd.f32 %v661, %v662
  %v664 = vrot.slane %v663, 1
  %v665 = vadd.f32 %v663, %v664
  %v666 = vsel %vm57, %v25, 0.0
  %v667 = vrot.slane %v666, 4
  %v668 = vadd.f32 %v666, %v667
  %v669 = vrot.slane %v668, 2
  %v670 = vadd.f32 %v668, %v669
  %v671 = vrot.slane %v670, 1
  %v672 = vadd.f32 %v670, %v671
  %v673 = vmul.f32 %v623, 0.125
  %v674 = vmul.f32 %v630, 0.125
  %v675 = vmul.f32 %v637, 0.125
  %v676 = vmul.f32 %v644, 0.125
  %v677 = vmul.f32 %v651, 0.125
  %v678 = vmul.f32 %v658, 0.125
  %v679 = vmul.f32 %v665, 0.125
  %v680 = vmul.f32 %v672, 0.125
  %689 = vrot.lane.b32.xlu0 %v569, 96
  %v690 = vpop.permute.xlu0 %689
  %691 = vrot.lane.b32.xlu0 %v570, 96
  %v692 = vpop.permute.xlu0 %691
  %693 = vrot.lane.b32.xlu0 %v571, 96
  %v694 = vpop.permute.xlu0 %693
  %695 = vrot.lane.b32.xlu0 %v572, 96
  %v696 = vpop.permute.xlu0 %695
  %697 = vrot.lane.b32.xlu0 %v573, 96
  %v698 = vpop.permute.xlu0 %697
  %699 = vrot.lane.b32.xlu0 %v574, 96
  %v700 = vpop.permute.xlu0 %699
  %701 = vrot.lane.b32.xlu0 %v575, 96
  %v702 = vpop.permute.xlu0 %701
  %703 = vrot.lane.b32.xlu0 %v576, 96
  %v704 = vpop.permute.xlu0 %703
  %v713 = vsub.f32 %v673, %v690
  %v714 = vsub.f32 %v674, %v692
  %v715 = vsub.f32 %v675, %v694
  %v716 = vsub.f32 %v676, %v696
  %v717 = vsub.f32 %v677, %v698
  %v718 = vsub.f32 %v678, %v700
  %v719 = vsub.f32 %v679, %v702
  %v720 = vsub.f32 %v680, %v704
  %vm721 = vcmask 1041409
  %v722 = vsel %vm721, %v570, %v569
  %vm723 = vcmask 1042434
  %v724 = vsel %vm723, %v571, %v722
  %vm725 = vcmask 1043459
  %v726 = vsel %vm725, %v572, %v724
  %vm727 = vcmask 1044484
  %v728 = vsel %vm727, %v573, %v726
  %vm729 = vcmask 1045509
  %v730 = vsel %vm729, %v574, %v728
  %vm731 = vcmask 1046534
  %v732 = vsel %vm731, %v575, %v730
  %vm733 = vcmask 1047559
  %v734 = vsel %vm733, %v576, %v732
  %735 = vrot.lane.b32.xlu0 %v734, 96
  %v736 = vpop.permute.xlu0 %735
  %v737 = vsel %vm57, %v736, 0
  %739 = vmatpush.msra.mxu0 0.0
  %740 = vmatpush.msra.mxu0 0.0
  %741 = vmatpush.msra.mxu0 0.0
  %742 = vmatpush.msra.mxu0 0.0
  %743 = vmatpush.msra.mxu0 0.0
  %744 = vmatpush.msra.mxu0 0.0
  %745 = vmatpush.msra.mxu0 0.0
  %746 = vmatpush.msra.mxu0 0.0
  %747 = vmatpush.msra.mxu0 0.0
  %748 = vmatpush.msra.mxu0 0.0
  %749 = vmatpush.msra.mxu0 0.0
  %750 = vmatpush.msra.mxu0 0.0
  %751 = vmatpush.msra.mxu0 %v49
  %752 = vmatpush.msra.mxu0 %v48
  %753 = vmatpush.msra.mxu0 %v47
  %754 = vmatpush.msra.mxu0 %v46
  %755 = vmatmul.f32.gmra.mxu0 %v737
  %v756 = vpop.f32.mrf.mxu0
  %v757 = vadd.f32 0.0, %v756
  %758 = vdwg.mxu0
  %v767 = vsel %vm721, %v473, %v472
  %v768 = vsel %vm723, %v474, %v767
  %v769 = vsel %vm725, %v475, %v768
  %v770 = vsel %vm727, %v476, %v769
  %v771 = vsel %vm729, %v477, %v770
  %v772 = vsel %vm731, %v478, %v771
  %v773 = vsel %vm733, %v479, %v772
  %v774 = vsel %vm57, %v773, 0
  %776 = vmatpush.msra.mxu0 0.0
  %777 = vmatpush.msra.mxu0 0.0
  %778 = vmatpush.msra.mxu0 0.0
  %779 = vmatpush.msra.mxu0 0.0
  %780 = vmatpush.msra.mxu0 0.0
  %781 = vmatpush.msra.mxu0 0.0
  %782 = vmatpush.msra.mxu0 0.0
  %783 = vmatpush.msra.mxu0 0.0
  %784 = vmatpush.msra.mxu0 0.0
  %785 = vmatpush.msra.mxu0 0.0
  %786 = vmatpush.msra.mxu0 0.0
  %787 = vmatpush.msra.mxu0 0.0
  %788 = vmatpush.msra.mxu0 %v45
  %789 = vmatpush.msra.mxu0 %v44
  %790 = vmatpush.msra.mxu0 %v43
  %791 = vmatpush.msra.mxu0 %v42
  %792 = vmatmul.f32.gmra.mxu0 %v774
  %v793 = vpop.f32.mrf.mxu0
  %v794 = vadd.f32 %v757, %v793
  %795 = vdwg.mxu0
  %v796 = vperm.slane %v56, 0
  %v797 = vadd.f32 %v794, %v796
  %v808 = vsel %vm721, %v610, %v609
  %v809 = vsel %vm723, %v611, %v808
  %v810 = vsel %vm725, %v612, %v809
  %v811 = vsel %vm727, %v613, %v810
  %v812 = vsel %vm729, %v614, %v811
  %v813 = vsel %vm731, %v615, %v812
  %v814 = vsel %vm733, %v616, %v813
  %v824 = vrot.slane %v714, 7
  %v825 = vsel %vm721, %v824, %v713
  %v826 = vrot.slane %v715, 6
  %v827 = vsel %vm723, %v826, %v825
  %v828 = vrot.slane %v716, 5
  %v829 = vsel %vm725, %v828, %v827
  %v830 = vrot.slane %v717, 4
  %v831 = vsel %vm727, %v830, %v829
  %v832 = vrot.slane %v718, 3
  %v833 = vsel %vm729, %v832, %v831
  %v834 = vrot.slane %v719, 2
  %v835 = vsel %vm731, %v834, %v833
  %v836 = vrot.slane %v720, 1
  %v837 = vsel %vm733, %v836, %v835
  %v839 = vmul.f32 %v797, %v797
  %v840 = vmul.f32 %v773, %v773
  %v841 = vmul.f32 %v736, %v736
  %v842 = vmul.f32 %v814, %v814
  %v843 = vmul.f32 %v837, %v837
  %v844 = vsel %vm57, %v839, 0.0
  %845 = vadd.xlane.f32.xlu0 %v844
  %v846 = vpop.xlane.xlu0 %845
  %v847 = vsel %vm57, %v840, 0.0
  %848 = vadd.xlane.f32.xlu0 %v847
  %v849 = vpop.xlane.xlu0 %848
  %v850 = vsel %vm57, %v841, 0.0
  %851 = vadd.xlane.f32.xlu0 %v850
  %v852 = vpop.xlane.xlu0 %851
  %v853 = vsel %vm57, %v842, 0.0
  %854 = vadd.xlane.f32.xlu0 %v853
  %v855 = vpop.xlane.xlu0 %854
  %v856 = vsel %vm57, %v843, 0.0
  %857 = vadd.xlane.f32.xlu0 %v856
  %v858 = vpop.xlane.xlu0 %857
  %v859 = vmax.f32 %v846, 1e-24
  %v860 = vmax.f32 %v849, 1e-24
  %v861 = vmax.f32 %v852, 1e-24
  %v862 = vmax.f32 %v855, 1e-24
  %v863 = vmax.f32 %v858, 1e-24
  %v864 = vrsqrt.pop %v859
  %v865 = vmul.f32 %v864, %v859
  %v866 = vmul.f32 %v865, %v864
  %v867 = vmul.f32 0.5, %v866
  %v868 = vsub.f32 1.5, %v867
  %v869 = vmul.f32 %v864, %v868
  %vm870 = vweird.f32 %v859
  %vm871 = vweird.f32 %v864
  %vm872 = vmor %vm870, %vm871
  %v873 = vsel %vm872, %v864, %v869
  %v874 = vrsqrt.pop %v860
  %v875 = vmul.f32 %v874, %v860
  %v876 = vmul.f32 %v875, %v874
  %v877 = vmul.f32 0.5, %v876
  %v878 = vsub.f32 1.5, %v877
  %v879 = vmul.f32 %v874, %v878
  %vm880 = vweird.f32 %v860
  %vm881 = vweird.f32 %v874
  %vm882 = vmor %vm880, %vm881
  %v883 = vsel %vm882, %v874, %v879
  %v884 = vrsqrt.pop %v861
  %v885 = vmul.f32 %v884, %v861
  %v886 = vmul.f32 %v885, %v884
  %v887 = vmul.f32 0.5, %v886
  %v888 = vsub.f32 1.5, %v887
  %v889 = vmul.f32 %v884, %v888
  %vm890 = vweird.f32 %v861
  %vm891 = vweird.f32 %v884
  %vm892 = vmor %vm890, %vm891
  %v893 = vsel %vm892, %v884, %v889
  %v894 = vrsqrt.pop %v862
  %v895 = vmul.f32 %v894, %v862
  %v896 = vmul.f32 %v895, %v894
  %v897 = vmul.f32 0.5, %v896
  %v898 = vsub.f32 1.5, %v897
  %v899 = vmul.f32 %v894, %v898
  %vm900 = vweird.f32 %v862
  %vm901 = vweird.f32 %v894
  %vm902 = vmor %vm900, %vm901
  %v903 = vsel %vm902, %v894, %v899
  %v904 = vrsqrt.pop %v863
  %v905 = vmul.f32 %v904, %v863
  %v906 = vmul.f32 %v905, %v904
  %v907 = vmul.f32 0.5, %v906
  %v908 = vsub.f32 1.5, %v907
  %v909 = vmul.f32 %v904, %v908
  %vm910 = vweird.f32 %v863
  %vm911 = vweird.f32 %v904
  %vm912 = vmor %vm910, %vm911
  %v913 = vsel %vm912, %v904, %v909
  %v915 = vsel %vm57, %v797, 0
  %v917 = vsel %vm57, %v814, 0
  %v919 = vsel %vm57, %v837, 0
  %921 = vmatpush.msra.mxu0 0.0
  %922 = vmatpush.msra.mxu0 0.0
  %923 = vmatpush.msra.mxu0 0.0
  %924 = vmatpush.msra.mxu0 0.0
  %925 = vmatpush.msra.mxu0 0.0
  %926 = vmatpush.msra.mxu0 0.0
  %927 = vmatpush.msra.mxu0 0.0
  %928 = vmatpush.msra.mxu0 0.0
  %929 = vmatpush.msra.mxu0 0.0
  %930 = vmatpush.msra.mxu0 0.0
  %931 = vmatpush.msra.mxu0 0.0
  %932 = vmatpush.msra.mxu0 0.0
  %933 = vmatpush.msra.mxu0 %v53
  %934 = vmatpush.msra.mxu0 %v52
  %935 = vmatpush.msra.mxu0 %v51
  %936 = vmatpush.msra.mxu0 %v50
  %937 = vmatmul.f32.gmra.mxu0 %v915
  %v938 = vpop.f32.mrf.mxu0
  %v939 = vadd.f32 0.0, %v938
  %940 = vmatmul.f32.gmra.mxu0 %v774
  %v941 = vpop.f32.mrf.mxu0
  %v942 = vadd.f32 0.0, %v941
  %943 = vmatmul.f32.gmra.mxu0 %v737
  %v944 = vpop.f32.mrf.mxu0
  %v945 = vadd.f32 0.0, %v944
  %946 = vmatmul.f32.gmra.mxu0 %v917
  %v947 = vpop.f32.mrf.mxu0
  %v948 = vadd.f32 0.0, %v947
  %949 = vmatmul.f32.gmra.mxu0 %v919
  %v950 = vpop.f32.mrf.mxu0
  %v951 = vadd.f32 0.0, %v950
  %952 = vdwg.mxu0
  %v953 = vmul.f32 %v939, %v873
  %v954 = vmul.f32 %v942, %v883
  %v955 = vmul.f32 %v945, %v893
  %v956 = vmul.f32 %v948, %v903
  %v957 = vmul.f32 %v951, %v913
  %v958 = vmul.f32 %v953, 20.0
  %v959 = vmul.f32 %v954, 20.0
  %v960 = vmul.f32 %v955, 20.0
  %v961 = vmul.f32 %v956, 20.0
  %v962 = vmul.f32 %v957, 20.0
  %v963 = vld [vmem:[%s2] sm:$0xff]
  %v964 = vld [vmem:[%s2 + $0x8] sm:$0xff]
  %v965 = vld [vmem:[%s2 + $0x10] sm:$0xff]
  %v966 = vld [vmem:[%s2 + $0x18] sm:$0xff]
  %v967 = vld [vmem:[%s2 + $0x20] sm:$0xff]
  %vm968 = vcmask 48128
  %v969 = vsel %vm968, %v958, -inf
  %970 = vmax.xlane.f32.xlu0 %v969
  %v971 = vpop.xlane.xlu0 %970
  %v972 = vsel %vm968, %v959, -inf
  %973 = vmax.xlane.f32.xlu0 %v972
  %v974 = vpop.xlane.xlu0 %973
  %v975 = vsel %vm968, %v960, -inf
  %976 = vmax.xlane.f32.xlu0 %v975
  %v977 = vpop.xlane.xlu0 %976
  %v978 = vsel %vm968, %v961, -inf
  %979 = vmax.xlane.f32.xlu0 %v978
  %v980 = vpop.xlane.xlu0 %979
  %v981 = vsel %vm968, %v962, -inf
  %982 = vmax.xlane.f32.xlu0 %v981
  %v983 = vpop.xlane.xlu0 %982
  %v984 = vsub.f32 %v958, %v971
  %v985 = vsub.f32 %v959, %v974
  %v986 = vsub.f32 %v960, %v977
  %v987 = vsub.f32 %v961, %v980
  %v988 = vsub.f32 %v962, %v983
  %v989 = vmul.f32 %v984, 1.442695
  %v990 = vpow.pop %v989
  %v991 = vmul.f32 %v985, 1.442695
  %v992 = vpow.pop %v991
  %v993 = vmul.f32 %v986, 1.442695
  %v994 = vpow.pop %v993
  %v995 = vmul.f32 %v987, 1.442695
  %v996 = vpow.pop %v995
  %v997 = vmul.f32 %v988, 1.442695
  %v998 = vpow.pop %v997
  %v999 = vsel %vm968, %v990, 0.0
  %1000 = vadd.xlane.f32.xlu0 %v999
  %v1001 = vpop.xlane.xlu0 %1000
  %v1002 = vsel %vm968, %v992, 0.0
  %1003 = vadd.xlane.f32.xlu0 %v1002
  %v1004 = vpop.xlane.xlu0 %1003
  %v1005 = vsel %vm968, %v994, 0.0
  %1006 = vadd.xlane.f32.xlu0 %v1005
  %v1007 = vpop.xlane.xlu0 %1006
  %v1008 = vsel %vm968, %v996, 0.0
  %1009 = vadd.xlane.f32.xlu0 %v1008
  %v1010 = vpop.xlane.xlu0 %1009
  %v1011 = vsel %vm968, %v998, 0.0
  %1012 = vadd.xlane.f32.xlu0 %v1011
  %v1013 = vpop.xlane.xlu0 %1012
  %v1014 = vlog2.pop %v1001
  %v1015 = vmul.f32 %v1014, 0.6931472
  %v1016 = vlog2.pop %v1004
  %v1017 = vmul.f32 %v1016, 0.6931472
  %v1018 = vlog2.pop %v1007
  %v1019 = vmul.f32 %v1018, 0.6931472
  %v1020 = vlog2.pop %v1010
  %v1021 = vmul.f32 %v1020, 0.6931472
  %v1022 = vlog2.pop %v1013
  %v1023 = vmul.f32 %v1022, 0.6931472
  %v1024 = vadd.f32 %v971, %v1015
  %v1025 = vadd.f32 %v974, %v1017
  %v1026 = vadd.f32 %v977, %v1019
  %v1027 = vadd.f32 %v980, %v1021
  %v1028 = vadd.f32 %v983, %v1023
  %v1029 = vmul.f32 %v958, %v963
  %v1030 = vmul.f32 %v959, %v964
  %v1031 = vmul.f32 %v960, %v965
  %v1032 = vmul.f32 %v961, %v966
  %v1033 = vmul.f32 %v962, %v967
  %v1034 = vsel %vm968, %v1029, 0.0
  %1035 = vadd.xlane.f32.xlu0 %v1034
  %v1036 = vpop.xlane.xlu0 %1035
  %v1037 = vsel %vm968, %v1030, 0.0
  %1038 = vadd.xlane.f32.xlu0 %v1037
  %v1039 = vpop.xlane.xlu0 %1038
  %v1040 = vsel %vm968, %v1031, 0.0
  %1041 = vadd.xlane.f32.xlu0 %v1040
  %v1042 = vpop.xlane.xlu0 %1041
  %v1043 = vsel %vm968, %v1032, 0.0
  %1044 = vadd.xlane.f32.xlu0 %v1043
  %v1045 = vpop.xlane.xlu0 %1044
  %v1046 = vsel %vm968, %v1033, 0.0
  %1047 = vadd.xlane.f32.xlu0 %v1046
  %v1048 = vpop.xlane.xlu0 %1047
  %v1049 = vsub.f32 %v1024, %v1036
  %v1050 = vsub.f32 %v1025, %v1039
  %v1051 = vsub.f32 %v1026, %v1042
  %v1052 = vsub.f32 %v1027, %v1045
  %v1053 = vsub.f32 %v1028, %v1048
  %v1054 = vmul.f32 %v1049, %v963
  %v1055 = vmul.f32 %v1050, %v964
  %v1056 = vmul.f32 %v1051, %v965
  %v1057 = vmul.f32 %v1052, %v966
  %v1058 = vmul.f32 %v1053, %v967
  %1064 = vrot.lane.b32.xlu0 %v1054, 121
  %v1065 = vpop.permute.xlu0 %1064
  %1066 = vrot.lane.b32.xlu0 %v1055, 121
  %v1067 = vpop.permute.xlu0 %1066
  %1068 = vrot.lane.b32.xlu0 %v1056, 121
  %v1069 = vpop.permute.xlu0 %1068
  %1070 = vrot.lane.b32.xlu0 %v1057, 121
  %v1071 = vpop.permute.xlu0 %1070
  %1072 = vrot.lane.b32.xlu0 %v1058, 121
  %v1073 = vpop.permute.xlu0 %1072
  %vm1079 = vcmask 7168
  %v1080 = vsel %vm1079, %v1065, 0.0
  %v1081 = vsel %vm1079, %v1067, 0.0
  %v1082 = vadd.f32 %v1080, %v1081
  %v1083 = vsel %vm1079, %v1069, 0.0
  %v1084 = vadd.f32 %v1082, %v1083
  %v1085 = vsel %vm1079, %v1071, 0.0
  %v1086 = vadd.f32 %v1084, %v1085
  %v1087 = vsel %vm1079, %v1073, 0.0
  %v1088 = vadd.f32 %v1086, %v1087
  %1089 = vadd.xlane.f32.xlu0 %v1088
  %v1090 = vpop.xlane.xlu0 %1089
  %v1091 = vrot.slane %v1090, 4
  %v1092 = vadd.f32 %v1090, %v1091
  %v1093 = vrot.slane %v1092, 2
  %v1094 = vadd.f32 %v1092, %v1093
  %v1095 = vrot.slane %v1094, 1
  %v1096 = vadd.f32 %v1094, %v1095
  %s1097 = vtos %v1096
  %v1098 = vlaneseq
  %v1099 = vand.u32 %v1098, 127
  %v1100 = vcvt.s32.f32 %v1099
  %vm1101 = vcmp.eq.f32.partialorder %v958, %v971
  %vm1102 = vcmp.eq.f32.partialorder %v959, %v974
  %vm1103 = vcmp.eq.f32.partialorder %v960, %v977
  %vm1104 = vcmp.eq.f32.partialorder %v961, %v980
  %vm1105 = vcmp.eq.f32.partialorder %v962, %v983
  %v1106 = vsel %vm1101, %v1100, 6.0
  %v1107 = vsel %vm1102, %v1100, 6.0
  %v1108 = vsel %vm1103, %v1100, 6.0
  %v1109 = vsel %vm1104, %v1100, 6.0
  %v1110 = vsel %vm1105, %v1100, 6.0
  %v1111 = vsel %vm968, %v1106, inf
  %1112 = vmin.xlane.f32.xlu0 %v1111
  %v1113 = vpop.xlane.xlu0 %1112
  %v1114 = vsel %vm968, %v1107, inf
  %1115 = vmin.xlane.f32.xlu0 %v1114
  %v1116 = vpop.xlane.xlu0 %1115
  %v1117 = vsel %vm968, %v1108, inf
  %1118 = vmin.xlane.f32.xlu0 %v1117
  %v1119 = vpop.xlane.xlu0 %1118
  %v1120 = vsel %vm968, %v1109, inf
  %1121 = vmin.xlane.f32.xlu0 %v1120
  %v1122 = vpop.xlane.xlu0 %1121
  %v1123 = vsel %vm968, %v1110, inf
  %1124 = vmin.xlane.f32.xlu0 %v1123
  %v1125 = vpop.xlane.xlu0 %1124
  %vm1126 = vcmp.eq.f32.partialorder %v1113, %v963
  %vm1127 = vcmp.eq.f32.partialorder %v1116, %v964
  %vm1128 = vcmp.eq.f32.partialorder %v1119, %v965
  %vm1129 = vcmp.eq.f32.partialorder %v1122, %v966
  %vm1130 = vcmp.eq.f32.partialorder %v1125, %v967
  %v1131 = vsel %vm1126, 1, 0
  %v1132 = vsel %vm1127, 1, 0
  %v1133 = vsel %vm1128, 1, 0
  %v1134 = vsel %vm1129, 1, 0
  %v1135 = vsel %vm1130, 1, 0
  %v1136 = vcvt.s32.f32 %v1131
  %v1137 = vcvt.s32.f32 %v1132
  %v1138 = vcvt.s32.f32 %v1133
  %v1139 = vcvt.s32.f32 %v1134
  %v1140 = vcvt.s32.f32 %v1135
  %1146 = vrot.lane.b32.xlu0 %v963, 126
  %v1147 = vpop.permute.xlu0 %1146
  %1148 = vrot.lane.b32.xlu0 %v964, 126
  %v1149 = vpop.permute.xlu0 %1148
  %1150 = vrot.lane.b32.xlu0 %v965, 126
  %v1151 = vpop.permute.xlu0 %1150
  %1152 = vrot.lane.b32.xlu0 %v966, 126
  %v1153 = vpop.permute.xlu0 %1152
  %1154 = vrot.lane.b32.xlu0 %v967, 126
  %v1155 = vpop.permute.xlu0 %1154
  %v1161 = vmul.f32 %v1136, %v1147
  %v1162 = vmul.f32 %v1137, %v1149
  %v1163 = vmul.f32 %v1138, %v1151
  %v1164 = vmul.f32 %v1139, %v1153
  %v1165 = vmul.f32 %v1140, %v1155
  %1171 = vrot.lane.b32.xlu0 %v1161, 122
  %v1172 = vpop.permute.xlu0 %1171
  %1173 = vrot.lane.b32.xlu0 %v1162, 122
  %v1174 = vpop.permute.xlu0 %1173
  %1175 = vrot.lane.b32.xlu0 %v1163, 122
  %v1176 = vpop.permute.xlu0 %1175
  %1177 = vrot.lane.b32.xlu0 %v1164, 122
  %v1178 = vpop.permute.xlu0 %1177
  %1179 = vrot.lane.b32.xlu0 %v1165, 122
  %v1180 = vpop.permute.xlu0 %1179
  %v1186 = vsel %vm1079, %v1172, 0.0
  %v1187 = vsel %vm1079, %v1174, 0.0
  %v1188 = vadd.f32 %v1186, %v1187
  %v1189 = vsel %vm1079, %v1176, 0.0
  %v1190 = vadd.f32 %v1188, %v1189
  %v1191 = vsel %vm1079, %v1178, 0.0
  %v1192 = vadd.f32 %v1190, %v1191
  %v1193 = vsel %vm1079, %v1180, 0.0
  %v1194 = vadd.f32 %v1192, %v1193
  %1195 = vadd.xlane.f32.xlu0 %v1194
  %v1196 = vpop.xlane.xlu0 %1195
  %v1197 = vrot.slane %v1196, 4
  %v1198 = vadd.f32 %v1196, %v1197
  %v1199 = vrot.slane %v1198, 2
  %v1200 = vadd.f32 %v1198, %v1199
  %v1201 = vrot.slane %v1200, 1
  %v1202 = vadd.f32 %v1200, %v1201
  %s1203 = vtos %v1202
  %1204 = vst.msk [vmem:[%s3] sm:$0xff] %vm57, %v797
  %1205 = vst.msk [vmem:[%s3 + $0x8] sm:$0xff] %vm57, %v814
  %1206 = vst.msk [vmem:[%s3 + $0x10] sm:$0xff] %vm57, %v837
  %v1207 = vlaneseq
  %v1208 = vshrl.u32 %v1207, 7
  %vm1209 = vcmp.eq.s32.totalorder %v1208, 0
  %vm1210 = vcmp.eq.s32.totalorder %v1208, 1
  %v1211 = vstv %s1203
  %v1212 = vsel %vm1210, %v1211, 0.0
  %v1213 = vstv %s1097
  %v1214 = vsel %vm1209, %v1213, %v1212
  %1215 = vst.msk [vmem:[%s3 + $0x18] sm:$0xff] %vm57, %v1214
  // Predicated region
  $region14: #{_forward_core.1} parent=0 // pred_check
    _
  $region15: #{_forward_core.1} parent=0 // pred_check_branch
    %1217 = sbr.rel (0) target = $region17
  $region16: #{_forward_core.1} parent=0 // pred_region
    _
  $region17: #{_forward_core.1} parent=0 // pred_fallthru
    _
  // Predicated region
  $region18: #{_forward_core.1} parent=0 // pred_check
    _
  $region19: #{_forward_core.1} parent=0 // pred_check_branch
    %1219 = sbr.rel (0) target = $region21
  $region20: #{_forward_core.1} parent=0 // pred_region
    _
  $region21: #{_forward_core.1} parent=0 // pred_fallthru
    _

</llo_original>
